<compile_context>
chip_gen: v7x
topology: tpu7x:2x2x1
jax: 0.10.0
libtpu: 0.0.40
codegen_flags: <defaults>
</compile_context>

<pallas_src>
import math

import jax
import jax.numpy as jnp
from jax.experimental import pallas as pl
from jax.experimental.pallas import tpu as pltpu


def _make_row_chain_kernel(acc_rows):
    """Builds the kernel body for a given (static) accumulator row count."""

    def kernel(x_ref, o_ref, acc_ref):
        # x_ref:   (Cblk, S, S)        tile of layer (L-1-l) for current heads
        # o_ref:   (Cblk, 1, S)        resident output tile (row 0 of product)
        # acc_ref: (Cblk, acc_rows, S) f32 scratch accumulator
        l = pl.program_id(2)

        @pl.when(l == 0)
        def _init():
            # Seed with the first `acc_rows` rows of the LAST layer
            # (index_map reverses the L axis); only row 0 is ever consumed.
            acc_ref[...] = x_ref[:, 0:acc_rows, :].astype(jnp.float32)

        @pl.when(l > 0)
        def _step():
            lhs = acc_ref[...].astype(x_ref.dtype)
            # Batched (rows x S) @ (S x S) per head; jnp.dot is NOT batched.
            acc_ref[...] = jnp.einsum(
                "cij,cjk->cik", lhs, x_ref[...],
                preferred_element_type=jnp.float32,
            )

        @pl.when(l == pl.num_programs(2) - 1)
        def _finalize():
            o_ref[...] = acc_ref[:, 0:1, :].astype(o_ref.dtype)

    return kernel


def _pick_head_block(C, S, itemsize, budget_bytes):
    """Largest divisor of C whose double-buffered input tiles fit the budget."""
    sublane = 16 if itemsize == 2 else 8
    s_sub = ((S + sublane - 1) // sublane) * sublane
    s_lane = ((S + 127) // 128) * 128
    per_head = s_sub * s_lane * itemsize  # padded VMEM footprint of one (S,S) tile
    best = 1
    for d in range(1, C + 1):
        if C % d == 0 and 2 * d * per_head <= budget_bytes:
            best = d
    return best


def part_attention(xs, *, compute_dtype=None, vmem_budget_bytes=12 * 1024 * 1024):
    """JAX/Pallas equivalent of Part_Attention.forward.

    xs: list/tuple of L arrays (B, C, S, S), or a pre-stacked (L, B, C, S, S)
        array (preferred for this memory-bound op: avoids an extra HBM pass
        from jnp.stack).
    compute_dtype: optionally cast inputs (e.g. jnp.bfloat16 halves HBM
        traffic; validate argmax stability on real checkpoints before using).
    Returns (last_map, max_inx, max_value, attention_map) matching the
    PyTorch module (max_inx is int32 here vs torch's int64).
    """
    if isinstance(xs, (list, tuple)):
        x = jnp.stack(xs, axis=0)  # (L, B, C, S, S)
    else:
        x = xs
    if compute_dtype is not None:
        x = x.astype(compute_dtype)

    L, B, C, S, S2 = x.shape
    assert S == S2, "attention maps must be square"

    cblk = _pick_head_block(C, S, x.dtype.itemsize, vmem_budget_bytes)
    acc_rows = min(8, S)

    row0 = pl.pallas_call(
        _make_row_chain_kernel(acc_rows),
        out_shape=jax.ShapeDtypeStruct((B, C, 1, S), x.dtype),
        grid_spec=pltpu.PrefetchScalarGridSpec(
            num_scalar_prefetch=0,
            grid=(B, C // cblk, L),
            in_specs=[
                # Reverse the L axis so step 0 sees x[L-1] and the chain
                # accumulates row0(x[L-1]) @ x[L-2] @ ... @ x[0].
                pl.BlockSpec(
                    (None, None, cblk, S, S),
                    lambda b, c, l: (L - 1 - l, b, c, 0, 0),
                )
            ],
            out_specs=pl.BlockSpec(
                (None, cblk, 1, S),
                lambda b, c, l: (b, c, 0, 0),
            ),
            scratch_shapes=[pltpu.VMEM((cblk, acc_rows, S), jnp.float32)],
        ),
        compiler_params=pltpu.CompilerParams(
            dimension_semantics=("parallel", "parallel", "arbitrary")
        ),
        # NOTE: if xprof ever shows exposed input DMA, add
        # pipeline_mode=pl.Buffered(3) on the input BlockSpec.
    )(x)

    # Epilogue (glue): drop the CLS column, max + argmax over patches,
    # reshape to the square attention map.
    last_map = row0[:, :, 0, 1:]                 # (B, C, P)
    max_value = jnp.max(last_map, axis=2)        # (B, C)
    max_inx = jnp.argmax(last_map, axis=2)       # (B, C)  (int32 vs torch int64)
    P = last_map.shape[-1]
    Hs = int(math.isqrt(P))
    attention_map = last_map.reshape(B, C, Hs, Hs)
    return last_map, max_inx, max_value, attention_map


def _reference(xs):
    """Pure-JAX reference mirroring the PyTorch forward."""
    last = xs[0]
    for i in range(1, len(xs)):
        last = jnp.einsum("bcij,bcjk->bcik", xs[i], last)
    last = last[:, :, 0, 1:]
    B, C, P = last.shape
    H = int(math.isqrt(P))
    return last, jnp.argmax(last, 2), jnp.max(last, 2), last.reshape(B, C, H, H)


if __name__ == "__main__":
    # Small shapes consistent with the module: L attention maps of (B, C, S, S),
    # S = 1 + patch_num with patch_num a perfect square.
    # TODO(synk): at this tiny S (17) plain XLA batched matmul would beat any
    # kernel; the Pallas path is sized for realistic ViT S (~197).
    L, B, C = 3, 2, 4
    patch_num = 16
    S = 1 + patch_num

    key = jax.random.PRNGKey(0)
    keys = jax.random.split(key, L)
    # Row-softmaxed random maps (like real attention probabilities).
    xs = [
        jax.nn.softmax(
            jax.random.normal(k, (B, C, S, S), dtype=jnp.float32), axis=-1
        )
        for k in keys
    ]

    last_map, max_inx, max_value, attention_map = part_attention(xs)
    jax.block_until_ready((last_map, max_inx, max_value, attention_map))

    # Sanity check against a pure-JAX reference.
    ref_last, ref_inx, ref_val, ref_attn = _reference(xs)
    assert jnp.allclose(last_map, ref_last, atol=1e-5, rtol=1e-5)
    assert jnp.allclose(max_value, ref_val, atol=1e-5, rtol=1e-5)
    assert jnp.array_equal(max_inx, ref_inx)
    assert jnp.allclose(attention_map, ref_attn, atol=1e-5, rtol=1e-5)
    assert last_map.shape == (B, C, patch_num)
    assert max_inx.shape == (B, C) and max_value.shape == (B, C)
    assert attention_map.shape == (B, C, 4, 4)

    print("KERNEL_OK")
</pallas_src>

<mosaic_0001>
module attributes {stable_mosaic.version = 11 : i64} {
  func.func @kernel(%arg0: i32, %arg1: i32, %arg2: i32, %arg3: memref<1x1x4x17x17xf32, #tpu.memory_space<vmem>>, %arg4: memref<1x4x1x17xf32, #tpu.memory_space<vmem>>, %arg5: memref<4x8x17xf32, #tpu.memory_space<vmem>>) attributes {dimension_semantics = [#tpu.dimension_semantics<parallel>, #tpu.dimension_semantics<parallel>, #tpu.dimension_semantics<arbitrary>], iteration_bounds = array<i64: 2, 1, 3>, scalar_prefetch = 0 : i64, scratch_operands = 1 : i64, tpu.core_type = #tpu.core_type<tc>, window_params = [{transform_indices = @transform_0, window_bounds = array<i64: 1, 1, 4, 17, 17>}, {transform_indices = @transform_1, window_bounds = array<i64: 1, 4, 1, 17>}]} {
    %c0_i32 = arith.constant 0 : i32
    %0 = arith.cmpi eq, %arg2, %c0_i32 : i32
    %1 = arith.extui %0 : i1 to i32
    %c0_i32_0 = arith.constant 0 : i32
    %2 = arith.cmpi ne, %1, %c0_i32_0 : i32
    scf.if %2 {
      %c0 = arith.constant 0 : index
      %c0_4 = arith.constant 0 : index
      %c0_5 = arith.constant 0 : index
      %c0_6 = arith.constant 0 : index
      %c0_7 = arith.constant 0 : index
      %9 = vector.load %arg3[%c0, %c0_4, %c0_5, %c0_6, %c0_7] : memref<1x1x4x17x17xf32, #tpu.memory_space<vmem>>, vector<1x1x4x8x17xf32>
      %10 = vector.shape_cast %9 : vector<1x1x4x8x17xf32> to vector<4x8x17xf32>
      %c0_8 = arith.constant 0 : index
      %c0_9 = arith.constant 0 : index
      %c0_10 = arith.constant 0 : index
      %11 = vector.load %arg5[%c0_8, %c0_9, %c0_10] : memref<4x8x17xf32, #tpu.memory_space<vmem>>, vector<4x8x17xf32>
      tpu.vector_store %arg5[%c0_8, %c0_9, %c0_10], %10 {strides = array<i32>} : memref<4x8x17xf32, #tpu.memory_space<vmem>>, vector<4x8x17xf32>,
    } else {
    }
    %c0_i32_1 = arith.constant 0 : i32
    %3 = arith.cmpi sgt, %arg2, %c0_i32_1 : i32
    %4 = arith.extui %3 : i1 to i32
    %c0_i32_2 = arith.constant 0 : i32
    %5 = arith.cmpi ne, %4, %c0_i32_2 : i32
    scf.if %5 {
      %c0 = arith.constant 0 : index
      %c0_4 = arith.constant 0 : index
      %c0_5 = arith.constant 0 : index
      %9 = vector.load %arg5[%c0, %c0_4, %c0_5] : memref<4x8x17xf32, #tpu.memory_space<vmem>>, vector<4x8x17xf32>
      %c0_6 = arith.constant 0 : index
      %c0_7 = arith.constant 0 : index
      %c0_8 = arith.constant 0 : index
      %c0_9 = arith.constant 0 : index
      %c0_10 = arith.constant 0 : index
      %10 = vector.load %arg3[%c0_6, %c0_7, %c0_8, %c0_9, %c0_10] : memref<1x1x4x17x17xf32, #tpu.memory_space<vmem>>, vector<1x1x4x17x17xf32>
      %11 = vector.shape_cast %10 : vector<1x1x4x17x17xf32> to vector<4x17x17xf32>
      "tpu.trace_start"() <{level = 10 : i32, message = "cij,cjk->cik"}> : () -> ()
      %cst = arith.constant dense<0.000000e+00> : vector<4x8x17xf32>
      %12 = tpu.matmul %9, %11, %cst {dimension_numbers = #tpu.dot_dimension_numbers<[2], [1], [1], [2], [0, 0, 0, 1, 1, 2], [0], [0]>} : vector<4x8x17xf32>, vector<4x17x17xf32>, vector<4x8x17xf32> -> vector<4x8x17xf32>
      "tpu.trace_stop"() : () -> ()
      %c0_11 = arith.constant 0 : index
      %c0_12 = arith.constant 0 : index
      %c0_13 = arith.constant 0 : index
      %13 = vector.load %arg5[%c0_11, %c0_12, %c0_13] : memref<4x8x17xf32, #tpu.memory_space<vmem>>, vector<4x8x17xf32>
      tpu.vector_store %arg5[%c0_11, %c0_12, %c0_13], %12 {strides = array<i32>} : memref<4x8x17xf32, #tpu.memory_space<vmem>>, vector<4x8x17xf32>,
    } else {
    }
    %c2_i32 = arith.constant 2 : i32
    %6 = arith.cmpi eq, %arg2, %c2_i32 : i32
    %7 = arith.extui %6 : i1 to i32
    %c0_i32_3 = arith.constant 0 : i32
    %8 = arith.cmpi ne, %7, %c0_i32_3 : i32
    scf.if %8 {
      %c0 = arith.constant 0 : index
      %c0_4 = arith.constant 0 : index
      %c0_5 = arith.constant 0 : index
      %9 = vector.load %arg5[%c0, %c0_4, %c0_5] : memref<4x8x17xf32, #tpu.memory_space<vmem>>, vector<4x1x17xf32>
      %c0_6 = arith.constant 0 : index
      %c0_7 = arith.constant 0 : index
      %c0_8 = arith.constant 0 : index
      %c0_9 = arith.constant 0 : index
      %10 = vector.load %arg4[%c0_6, %c0_7, %c0_8, %c0_9] : memref<1x4x1x17xf32, #tpu.memory_space<vmem>>, vector<1x4x1x17xf32>
      %11 = vector.shape_cast %10 : vector<1x4x1x17xf32> to vector<4x1x17xf32>
      %12 = vector.shape_cast %9 : vector<4x1x17xf32> to vector<1x4x1x17xf32>
      tpu.vector_store %arg4[%c0_6, %c0_7, %c0_8, %c0_9], %12 {strides = array<i32>} : memref<1x4x1x17xf32, #tpu.memory_space<vmem>>, vector<1x4x1x17xf32>,
    } else {
    }
    return
  }
  func.func @transform_0(%arg0: i32, %arg1: i32, %arg2: i32) -> (i32, i32, i32, i32, i32) {
    %c2_i32 = arith.constant 2 : i32
    %0 = arith.subi %c2_i32, %arg2 : i32
    %c0_i32 = arith.constant 0 : i32
    %c0_i32_0 = arith.constant 0 : i32
    %c0_i32_1 = arith.constant 0 : i32
    return %0, %arg0, %arg1, %c0_i32, %c0_i32_0 : i32, i32, i32, i32, i32
  }
  func.func @transform_1(%arg0: i32, %arg1: i32, %arg2: i32) -> (i32, i32, i32, i32) {
    %c0_i32 = arith.constant 0 : i32
    %c0_i32_0 = arith.constant 0 : i32
    %c0_i32_1 = arith.constant 0 : i32
    return %arg0, %arg1, %c0_i32, %c0_i32_0 : i32, i32, i32, i32
  }
}

</mosaic_0001>

<llo_original>
// kernel: tpu_custom_call.1
$region0: #{tpu_custom_call.1}
  #allocation0 [shape = 'u32[]', space=smem, size = 0x4, offset = 0x4, fixed_abs, tag = 'smem constant byte address 0x4 - core index']
  #allocation1 [shape = 'u32[144,128]{1,0:T(1,128)}', space=vmem, size = 0x12000, scoped, tag = 'internal scratch']
  #allocation2 [shape = 'f32[4,8,17]{2,1,0:T(8,128)}', space=vmem, size = 0x4000, scoped, tag = 'scratch operand']
  %s0 = inlined_call_operand.vmem [shape: f32[3,2,4,17,17], index: 0, kind: input, shape index: {}]
  %s1 = inlined_call_operand.hbm [shape: f32[2,4,1,17], index: 1, kind: output, shape index: {}]
  %s2 = sld [smem:[#allocation0]]
  $region49: #{tpu_custom_call.1} parent=0
    _
  %s4 = ssub.s32 1, %s2
  %s5 = scalar_select 0, %s4, %s2
  $region1: #{tpu_custom_call.1} parent=0
    #allocation3 [shape = 'u8[4096]{0}', space=vmem, size = 0x1000, scoped, tag = 'output window, operand 0']
    #allocation4 [shape = 's32[2]{0}', space=sflag, size = 0x8, scoped, tag = 'scoped memory for tpu_custom_call.1']
    %6 = vsyncpa [#allocation4], 0
    %s7 = scalar_lea.sflag [#allocation4], 1
    %8 = vsyncpa %s7, 0
    loop: start=0, step=1, limit=8
    $region2: #{tpu_custom_call.1} parent=1 // loop_pre_header
      _
    $region3: #{tpu_custom_call.1} parent=1 // loop_header
      %s10 = sphi 0, %s14
      %p11 = scmp.ge.s32.totalorder %s10, 8
      %s17 = sphi 0, %s36
      %s18 = sphi 0, %s32
      %s19 = sphi 0, %s28
      %s20 = sphi 0, %s17
      %s21 = sphi 0, %s18
      %s22 = sphi 0, %s19
      %s23 = sphi 0, %s20
      %s24 = sphi 0, %s21
      %s25 = sphi 0, %s22
      %s45 = sphi 0, %s47
      %s48 = sphi 0, %s45
      %s49 = sphi 0, %s48
      %s65 = sphi 0, %s49
      %s73 = sphi 0, %s75
      %s76 = sphi 0, %s73
      %s77 = sphi 0, %s76
      %s93 = sphi 0, %s77
    $region4: #{tpu_custom_call.1} parent=1 // loop_header_branch
      %13 = sbr.rel (%p11) target = $region8
    $region5: #{tpu_custom_call.1} parent=1 // loop_body
      %s15 = ssub.s32 %s10, 1
      %s16 = ssub.s32 %s10, 2
      %s26 = sadd.s32 1, %s19
      %p27 = scmp.ge.s32.totalorder %s26, 3
      %s28 = scalar_select %p27, 0, %s26
      %s29 = sadd.s32 1, %s18
      %s30 = scalar_select %p27, %s29, %s18
      %p31 = scmp.ge.s32.totalorder %s30, 1
      %s32 = scalar_select %p31, 0, %s30
      %s33 = sadd.s32 1, %s17
      %s34 = scalar_select %p31, %s33, %s17
      %p35 = scmp.ge.s32.totalorder %s34, 2
      %s36 = scalar_select %p35, 0, %s34
      %s37 = ssub.s32 2, %s19
      %s38 = ssub.s32 2, %s28
      %s39 = ssub.s32 %s37, %s38
      %s40 = ssub.s32 %s17, %s36
      %s41 = sor.u32 %s39, %s40
      %s42 = ssub.s32 %s18, %s32
      %s43 = sor.u32 %s41, %s42
      %p44 = scmp.eq.s32.totalorder %s43, 0
      %s46 = sadd.s32 %s45, 1
      %s47 = scalar_select %p44, %s45, %s46
      %p50 = pneg %p44
      %p51 = scmp.eq.s32.totalorder %s10, 5
      %p52 = por %p50, %p51
      %p53 = scmp.ne.s32.totalorder %s45, %s48
      %p54 = scmp.eq.s32.totalorder %s10, 0
      %p55 = por %p53, %p54
      %p56 = scmp.ne.s32.totalorder %s45, %s48
      %p57 = scmp.eq.s32.totalorder %s15, 5
      %p58 = por %p56, %p57
      %p59 = scmp.ne.s32.totalorder %s48, %s49
      %p60 = scmp.eq.s32.totalorder %s15, 0
      %p61 = por %p59, %p60
      %p62 = scmp.ne.s32.totalorder %s48, %s49
      %p63 = scmp.eq.s32.totalorder %s16, 5
      %p64 = por %p62, %p63
      %p66 = scmp.ne.s32.totalorder %s49, %s65
      %p67 = scmp.eq.s32.totalorder %s16, 0
      %p68 = por %p66, %p67
      %s69 = ssub.s32 %s17, %s36
      %s70 = ssub.s32 %s18, %s32
      %s71 = sor.u32 %s69, %s70
      %p72 = scmp.eq.s32.totalorder %s71, 0
      %s74 = sadd.s32 %s73, 1
      %s75 = scalar_select %p72, %s73, %s74
      %p78 = pneg %p72
      %p79 = scmp.eq.s32.totalorder %s10, 5
      %p80 = por %p78, %p79
      %p81 = scmp.ne.s32.totalorder %s73, %s76
      %p82 = scmp.eq.s32.totalorder %s10, 0
      %p83 = por %p81, %p82
      %p84 = scmp.ne.s32.totalorder %s73, %s76
      %p85 = scmp.eq.s32.totalorder %s15, 5
      %p86 = por %p84, %p85
      %p87 = scmp.ne.s32.totalorder %s76, %s77
      %p88 = scmp.eq.s32.totalorder %s15, 0
      %p89 = por %p87, %p88
      %p90 = scmp.ne.s32.totalorder %s76, %s77
      %p91 = scmp.eq.s32.totalorder %s16, 5
      %p92 = por %p90, %p91
      %p94 = scmp.ne.s32.totalorder %s77, %s93
      %p95 = scmp.eq.s32.totalorder %s16, 0
      %p96 = por %p94, %p95
      %p97 = scmp.le.s32.totalorder 1, %s10
      %p98 = scmp.lt.s32.totalorder %s10, 7
      %p99 = pnand %p97, %p98
      %p100 = pneg %p99
      // Predicated region
      $region9: #{tpu_custom_call.1} parent=5 // pred_check
        _
      $region10: #{tpu_custom_call.1} parent=5 // pred_check_branch
        %102 = sbr.rel (%p99) target = $region12
      $region11: #{tpu_custom_call.1} parent=5 // pred_region
        %s103 = ssub.s32 %s10, 1
      $region12: #{tpu_custom_call.1} parent=5 // pred_fallthru
        _
      %p104 = scmp.lt.s32.totalorder %s10, 6
      // Predicated region
      $region13: #{tpu_custom_call.1} parent=5 // pred_check
        %p105 = pneg %p104
      $region14: #{tpu_custom_call.1} parent=5 // pred_check_branch
        %107 = sbr.rel (%p105) target = $region16
      $region15: #{tpu_custom_call.1} parent=5 // pred_region
        // Predicated region
        $region17: #{tpu_custom_call.1} parent=15 // pred_check
          %p108 = pneg %p55
        $region18: #{tpu_custom_call.1} parent=15 // pred_check_branch
          %110 = sbr.rel (%p108) target = $region20
        $region19: #{tpu_custom_call.1} parent=15 // pred_region
          %s111 = ssub.s32 2, %s19
          %s112 = smul.u32 4, %s18
          %p113 = scmp.lt.s32.totalorder %s111, 2
          %s114 = scalar_select %p113, %s111, 2
          %p115 = scmp.lt.s32.totalorder %s17, 1
          %s116 = scalar_select %p115, %s17, 1
          %p117 = scmp.lt.s32.totalorder %s112, 3
          %s118 = scalar_select %p117, %s112, 3
          %s119 = smul.addr %s118, 3
          %s120 = smul.addr %s116, 12
          %s121 = sadd.s32 %s119, %s120
          %s122 = smul.addr %s114, 24
          %s123 = sadd.s32 %s121, %s122
          %s124 = smul.addr %s123, 8
          %s125 = scalar_lea.vmem %s0, %s124
          %s126 = ssub.s32 2, %s19
          %s127 = smul.u32 4, %s18
        $region20: #{tpu_custom_call.1} parent=15 // pred_fallthru
          _
      $region16: #{tpu_custom_call.1} parent=5 // pred_fallthru
        _
      %p128 = scmp.le.s32.totalorder 1, %s10
      %p129 = scmp.lt.s32.totalorder %s10, 7
      %p130 = pnand %p128, %p129
      %p131 = pneg %p130
      // Predicated region
      $region21: #{tpu_custom_call.1} parent=5 // pred_check
        _
      $region22: #{tpu_custom_call.1} parent=5 // pred_check_branch
        %133 = sbr.rel (%p130) target = $region24
      $region23: #{tpu_custom_call.1} parent=5 // pred_region
        %s134 = ssub.s32 %s10, 1
        %s135 = ssub.s32 2, %s22
        %s136 = smul.u32 4, %s21
        %p137 = scmp.lt.s32.totalorder %s135, 2
        %s138 = scalar_select %p137, %s135, 2
        %p139 = scmp.lt.s32.totalorder %s20, 1
        %s140 = scalar_select %p139, %s20, 1
        %p141 = scmp.lt.s32.totalorder %s136, 3
        %s142 = scalar_select %p141, %s136, 3
        %s143 = smul.addr %s142, 3
        %s144 = smul.addr %s140, 12
        %s145 = sadd.s32 %s143, %s144
        %s146 = smul.addr %s138, 24
        %s147 = sadd.s32 %s145, %s146
        %s148 = smul.addr %s147, 8
        %s149 = scalar_lea.vmem %s0, %s148
        %p150 = pneg %p61
        %p151 = pneg %p58
        %p152 = pneg %p89
        %p153 = pneg %p86
        %s154 = sand.u32 %s76, 1
        %s155 = scalar_lea.sflag [#allocation4], %s154
        %s156 = sand.u32 %s76, 1
        %s157 = smul.addr %s156, 4
        %s158 = scalar_lea.vmem [#allocation3], %s157
        %s159 = ssub.s32 2, %s22
        %s160 = smul.u32 4, %s21
        %p161 = scmp.lt.s32.totalorder %s159, 2
        %s162 = scalar_select %p161, %s159, 2
        %p163 = scmp.lt.s32.totalorder %s20, 1
        %s164 = scalar_select %p163, %s20, 1
        %p165 = scmp.lt.s32.totalorder %s160, 3
        %s166 = scalar_select %p165, %s160, 3
        %s167 = smul.addr %s166, 3
        %s168 = smul.addr %s164, 12
        %s169 = sadd.s32 %s167, %s168
        %s170 = smul.addr %s162, 24
        %s171 = sadd.s32 %s169, %s170
        %s172 = smul.addr %s171, 8
        %s173 = scalar_lea.vmem %s0, %s172
        %s174 = ssub.s32 2, %s22
        %s175 = smul.u32 4, %s21
        %s176 = smul.u32 4, %s21
        %p177 = scmp.eq.s32.totalorder %s22, 0
        // Predicated region
        $region25: #{tpu_custom_call.1} parent=23 // pred_check
          %p178 = pneg %p177
        $region26: #{tpu_custom_call.1} parent=23 // pred_check_branch
          %180 = sbr.rel (%p178) target = $region28
        $region27: #{tpu_custom_call.1} parent=23 // pred_region
          %v181 = vld [vmem:[%s173] sm:$0xff]
          %v182 = vld [vmem:[%s173 + $0x18] sm:$0xff]
          %v183 = vld [vmem:[%s173 + $0x30] sm:$0xff]
          %v184 = vld [vmem:[%s173 + $0x48] sm:$0xff]
          %vm185 = vcmask 138240
          %186 = vst.msk [vmem:[#allocation2] sm:$0xff] %vm185, %v181
          %187 = vst.msk [vmem:[#allocation2 + $0x8] sm:$0xff] %vm185, %v182
          %188 = vst.msk [vmem:[#allocation2 + $0x10] sm:$0xff] %vm185, %v183
          %189 = vst.msk [vmem:[#allocation2 + $0x18] sm:$0xff] %vm185, %v184
        $region28: #{tpu_custom_call.1} parent=23 // pred_fallthru
          _
        %p190 = scmp.gt.s32.totalorder %s22, 0
        // Predicated region
        $region29: #{tpu_custom_call.1} parent=23 // pred_check
          %p191 = pneg %p190
        $region30: #{tpu_custom_call.1} parent=23 // pred_check_branch
          %193 = sbr.rel (%p191) target = $region32
        $region31: #{tpu_custom_call.1} parent=23 // pred_region
          %v194 = vld [vmem:[#allocation2] sm:$0xff]
          %v195 = vld [vmem:[#allocation2 + $0x8] sm:$0xff]
          %v196 = vld [vmem:[#allocation2 + $0x10] sm:$0xff]
          %v197 = vld [vmem:[#allocation2 + $0x18] sm:$0xff]
          %v198 = vld [vmem:[%s173] sm:$0xff]
          %v199 = vld [vmem:[%s173 + $0x8] sm:$0xff]
          %v200 = vld [vmem:[%s173 + $0x10] sm:$0x1]
          %v201 = vld [vmem:[%s173 + $0x18] sm:$0xff]
          %v202 = vld [vmem:[%s173 + $0x20] sm:$0xff]
          %v203 = vld [vmem:[%s173 + $0x28] sm:$0x1]
          %v204 = vld [vmem:[%s173 + $0x30] sm:$0xff]
          %v205 = vld [vmem:[%s173 + $0x38] sm:$0xff]
          %v206 = vld [vmem:[%s173 + $0x40] sm:$0x1]
          %v207 = vld [vmem:[%s173 + $0x48] sm:$0xff]
          %v208 = vld [vmem:[%s173 + $0x50] sm:$0xff]
          %v209 = vld [vmem:[%s173 + $0x58] sm:$0x1]
          %vm210 = vcmask 138240
          %v212 = vsel %vm210, %v194, 0
          %vm214 = vcmask 1040384
          %v216 = vsel %vm214, %v200, 0
          %218 = vmatprep.subr.mxu0 0.0
          %219 = vmatpush1.msra.mxu0 %v198
          %220 = vmatprep.subr.mxu0 0.0
          %221 = vmatpush1.msra.mxu0 %v199
          %222 = vmatprep.subr.mxu0 0.0
          %223 = vmatpush1.msra.mxu0 %v216
          %224 = vmatprep.subr.mxu0 0.0
          %225 = vmatpush1.msra.mxu0 0.0
          %226 = vmatprep.subr.mxu0 0.0
          %227 = vmatpush1.msra.mxu0 0.0
          %228 = vmatprep.subr.mxu0 0.0
          %229 = vmatpush1.msra.mxu0 0.0
          %230 = vmatprep.subr.mxu0 0.0
          %231 = vmatpush1.msra.mxu0 0.0
          %232 = vmatprep.subr.mxu0 0.0
          %233 = vmatpush1.msra.mxu0 0.0
          %234 = vmatprep.subr.mxu0 0.0
          %235 = vmatpush1.msra.mxu0 0.0
          %236 = vmatprep.subr.mxu0 0.0
          %237 = vmatpush1.msra.mxu0 0.0
          %238 = vmatprep.subr.mxu0 0.0
          %239 = vmatpush1.msra.mxu0 0.0
          %240 = vmatprep.subr.mxu0 0.0
          %241 = vmatpush1.msra.mxu0 0.0
          %242 = vmatprep.subr.mxu0 0.0
          %243 = vmatpush1.msra.mxu0 0.0
          %244 = vmatprep.subr.mxu0 0.0
          %245 = vmatpush1.msra.mxu0 0.0
          %246 = vmatprep.subr.mxu0 0.0
          %247 = vmatpush1.msra.mxu0 0.0
          %248 = vmatprep.subr.mxu0 0.0
          %249 = vmatpush1.msra.mxu0 0.0
          %250 = vmatprep.subr.mxu0 0.0
          %251 = vmatpush1.msra.mxu0 0.0
          %252 = vmatprep.subr.mxu0 0.0
          %253 = vmatpush1.msra.mxu0 0.0
          %254 = vmatprep.subr.mxu0 0.0
          %255 = vmatpush1.msra.mxu0 0.0
          %256 = vmatprep.subr.mxu0 0.0
          %257 = vmatpush1.msra.mxu0 0.0
          %258 = vmatprep.subr.mxu0 0.0
          %259 = vmatpush1.msra.mxu0 0.0
          %260 = vmatprep.subr.mxu0 0.0
          %261 = vmatpush1.msra.mxu0 0.0
          %262 = vmatprep.subr.mxu0 0.0
          %263 = vmatpush1.msra.mxu0 0.0
          %264 = vmatprep.subr.mxu0 0.0
          %265 = vmatpush1.msra.mxu0 0.0
          %266 = vmatprep.subr.mxu0 0.0
          %267 = vmatpush1.msra.mxu0 0.0
          %268 = vmatprep.subr.mxu0 0.0
          %269 = vmatpush1.msra.mxu0 0.0
          %270 = vmatprep.subr.mxu0 0.0
          %271 = vmatpush1.msra.mxu0 0.0
          %272 = vmatprep.subr.mxu0 0.0
          %273 = vmatpush1.msra.mxu0 0.0
          %274 = vmatprep.subr.mxu0 0.0
          %275 = vmatpush1.msra.mxu0 0.0
          %276 = vmatprep.subr.mxu0 0.0
          %277 = vmatpush1.msra.mxu0 0.0
          %278 = vmatprep.subr.mxu0 0.0
          %279 = vmatpush1.msra.mxu0 0.0
          %280 = vmatprep.subr.mxu0 0.0
          %281 = vmatpush1.msra.mxu0 0.0
          %282 = vmatprep.mubr.f32.mxu0 0.0
          %283 = vmatmul.mubr.f32.gmra.mrb[0].mxu0 %v212
          %v284 = vpop.f32.mrb[0].mxu0
          %v285 = vadd.f32 0.0, %v284
          %v286 = vpop.f32.mrb[0].mxu0
          %287 = vdwg.mxu0
          %v289 = vsel %vm210, %v195, 0
          %v292 = vsel %vm214, %v203, 0
          %294 = vmatprep.subr.mxu0 0.0
          %295 = vmatpush1.msra.mxu0 %v201
          %296 = vmatprep.subr.mxu0 0.0
          %297 = vmatpush1.msra.mxu0 %v202
          %298 = vmatprep.subr.mxu0 0.0
          %299 = vmatpush1.msra.mxu0 %v292
          %300 = vmatprep.subr.mxu0 0.0
          %301 = vmatpush1.msra.mxu0 0.0
          %302 = vmatprep.subr.mxu0 0.0
          %303 = vmatpush1.msra.mxu0 0.0
          %304 = vmatprep.subr.mxu0 0.0
          %305 = vmatpush1.msra.mxu0 0.0
          %306 = vmatprep.subr.mxu0 0.0
          %307 = vmatpush1.msra.mxu0 0.0
          %308 = vmatprep.subr.mxu0 0.0
          %309 = vmatpush1.msra.mxu0 0.0
          %310 = vmatprep.subr.mxu0 0.0
          %311 = vmatpush1.msra.mxu0 0.0
          %312 = vmatprep.subr.mxu0 0.0
          %313 = vmatpush1.msra.mxu0 0.0
          %314 = vmatprep.subr.mxu0 0.0
          %315 = vmatpush1.msra.mxu0 0.0
          %316 = vmatprep.subr.mxu0 0.0
          %317 = vmatpush1.msra.mxu0 0.0
          %318 = vmatprep.subr.mxu0 0.0
          %319 = vmatpush1.msra.mxu0 0.0
          %320 = vmatprep.subr.mxu0 0.0
          %321 = vmatpush1.msra.mxu0 0.0
          %322 = vmatprep.subr.mxu0 0.0
          %323 = vmatpush1.msra.mxu0 0.0
          %324 = vmatprep.subr.mxu0 0.0
          %325 = vmatpush1.msra.mxu0 0.0
          %326 = vmatprep.subr.mxu0 0.0
          %327 = vmatpush1.msra.mxu0 0.0
          %328 = vmatprep.subr.mxu0 0.0
          %329 = vmatpush1.msra.mxu0 0.0
          %330 = vmatprep.subr.mxu0 0.0
          %331 = vmatpush1.msra.mxu0 0.0
          %332 = vmatprep.subr.mxu0 0.0
          %333 = vmatpush1.msra.mxu0 0.0
          %334 = vmatprep.subr.mxu0 0.0
          %335 = vmatpush1.msra.mxu0 0.0
          %336 = vmatprep.subr.mxu0 0.0
          %337 = vmatpush1.msra.mxu0 0.0
          %338 = vmatprep.subr.mxu0 0.0
          %339 = vmatpush1.msra.mxu0 0.0
          %340 = vmatprep.subr.mxu0 0.0
          %341 = vmatpush1.msra.mxu0 0.0
          %342 = vmatprep.subr.mxu0 0.0
          %343 = vmatpush1.msra.mxu0 0.0
          %344 = vmatprep.subr.mxu0 0.0
          %345 = vmatpush1.msra.mxu0 0.0
          %346 = vmatprep.subr.mxu0 0.0
          %347 = vmatpush1.msra.mxu0 0.0
          %348 = vmatprep.subr.mxu0 0.0
          %349 = vmatpush1.msra.mxu0 0.0
          %350 = vmatprep.subr.mxu0 0.0
          %351 = vmatpush1.msra.mxu0 0.0
          %352 = vmatprep.subr.mxu0 0.0
          %353 = vmatpush1.msra.mxu0 0.0
          %354 = vmatprep.subr.mxu0 0.0
          %355 = vmatpush1.msra.mxu0 0.0
          %356 = vmatprep.subr.mxu0 0.0
          %357 = vmatpush1.msra.mxu0 0.0
          %358 = vmatprep.mubr.f32.mxu0 0.0
          %359 = vmatmul.mubr.f32.gmra.mrb[0].mxu0 %v289
          %v360 = vpop.f32.mrb[0].mxu0
          %v361 = vadd.f32 0.0, %v360
          %v362 = vpop.f32.mrb[0].mxu0
          %363 = vdwg.mxu0
          %v365 = vsel %vm210, %v196, 0
          %v368 = vsel %vm214, %v206, 0
          %370 = vmatprep.subr.mxu0 0.0
          %371 = vmatpush1.msra.mxu0 %v204
          %372 = vmatprep.subr.mxu0 0.0
          %373 = vmatpush1.msra.mxu0 %v205
          %374 = vmatprep.subr.mxu0 0.0
          %375 = vmatpush1.msra.mxu0 %v368
          %376 = vmatprep.subr.mxu0 0.0
          %377 = vmatpush1.msra.mxu0 0.0
          %378 = vmatprep.subr.mxu0 0.0
          %379 = vmatpush1.msra.mxu0 0.0
          %380 = vmatprep.subr.mxu0 0.0
          %381 = vmatpush1.msra.mxu0 0.0
          %382 = vmatprep.subr.mxu0 0.0
          %383 = vmatpush1.msra.mxu0 0.0
          %384 = vmatprep.subr.mxu0 0.0
          %385 = vmatpush1.msra.mxu0 0.0
          %386 = vmatprep.subr.mxu0 0.0
          %387 = vmatpush1.msra.mxu0 0.0
          %388 = vmatprep.subr.mxu0 0.0
          %389 = vmatpush1.msra.mxu0 0.0
          %390 = vmatprep.subr.mxu0 0.0
          %391 = vmatpush1.msra.mxu0 0.0
          %392 = vmatprep.subr.mxu0 0.0
          %393 = vmatpush1.msra.mxu0 0.0
          %394 = vmatprep.subr.mxu0 0.0
          %395 = vmatpush1.msra.mxu0 0.0
          %396 = vmatprep.subr.mxu0 0.0
          %397 = vmatpush1.msra.mxu0 0.0
          %398 = vmatprep.subr.mxu0 0.0
          %399 = vmatpush1.msra.mxu0 0.0
          %400 = vmatprep.subr.mxu0 0.0
          %401 = vmatpush1.msra.mxu0 0.0
          %402 = vmatprep.subr.mxu0 0.0
          %403 = vmatpush1.msra.mxu0 0.0
          %404 = vmatprep.subr.mxu0 0.0
          %405 = vmatpush1.msra.mxu0 0.0
          %406 = vmatprep.subr.mxu0 0.0
          %407 = vmatpush1.msra.mxu0 0.0
          %408 = vmatprep.subr.mxu0 0.0
          %409 = vmatpush1.msra.mxu0 0.0
          %410 = vmatprep.subr.mxu0 0.0
          %411 = vmatpush1.msra.mxu0 0.0
          %412 = vmatprep.subr.mxu0 0.0
          %413 = vmatpush1.msra.mxu0 0.0
          %414 = vmatprep.subr.mxu0 0.0
          %415 = vmatpush1.msra.mxu0 0.0
          %416 = vmatprep.subr.mxu0 0.0
          %417 = vmatpush1.msra.mxu0 0.0
          %418 = vmatprep.subr.mxu0 0.0
          %419 = vmatpush1.msra.mxu0 0.0
          %420 = vmatprep.subr.mxu0 0.0
          %421 = vmatpush1.msra.mxu0 0.0
          %422 = vmatprep.subr.mxu0 0.0
          %423 = vmatpush1.msra.mxu0 0.0
          %424 = vmatprep.subr.mxu0 0.0
          %425 = vmatpush1.msra.mxu0 0.0
          %426 = vmatprep.subr.mxu0 0.0
          %427 = vmatpush1.msra.mxu0 0.0
          %428 = vmatprep.subr.mxu0 0.0
          %429 = vmatpush1.msra.mxu0 0.0
          %430 = vmatprep.subr.mxu0 0.0
          %431 = vmatpush1.msra.mxu0 0.0
          %432 = vmatprep.subr.mxu0 0.0
          %433 = vmatpush1.msra.mxu0 0.0
          %434 = vmatprep.mubr.f32.mxu0 0.0
          %435 = vmatmul.mubr.f32.gmra.mrb[0].mxu0 %v365
          %v436 = vpop.f32.mrb[0].mxu0
          %v437 = vadd.f32 0.0, %v436
          %v438 = vpop.f32.mrb[0].mxu0
          %439 = vdwg.mxu0
          %v441 = vsel %vm210, %v197, 0
          %v444 = vsel %vm214, %v209, 0
          %446 = vmatprep.subr.mxu0 0.0
          %447 = vmatpush1.msra.mxu0 %v207
          %448 = vmatprep.subr.mxu0 0.0
          %449 = vmatpush1.msra.mxu0 %v208
          %450 = vmatprep.subr.mxu0 0.0
          %451 = vmatpush1.msra.mxu0 %v444
          %452 = vmatprep.subr.mxu0 0.0
          %453 = vmatpush1.msra.mxu0 0.0
          %454 = vmatprep.subr.mxu0 0.0
          %455 = vmatpush1.msra.mxu0 0.0
          %456 = vmatprep.subr.mxu0 0.0
          %457 = vmatpush1.msra.mxu0 0.0
          %458 = vmatprep.subr.mxu0 0.0
          %459 = vmatpush1.msra.mxu0 0.0
          %460 = vmatprep.subr.mxu0 0.0
          %461 = vmatpush1.msra.mxu0 0.0
          %462 = vmatprep.subr.mxu0 0.0
          %463 = vmatpush1.msra.mxu0 0.0
          %464 = vmatprep.subr.mxu0 0.0
          %465 = vmatpush1.msra.mxu0 0.0
          %466 = vmatprep.subr.mxu0 0.0
          %467 = vmatpush1.msra.mxu0 0.0
          %468 = vmatprep.subr.mxu0 0.0
          %469 = vmatpush1.msra.mxu0 0.0
          %470 = vmatprep.subr.mxu0 0.0
          %471 = vmatpush1.msra.mxu0 0.0
          %472 = vmatprep.subr.mxu0 0.0
          %473 = vmatpush1.msra.mxu0 0.0
          %474 = vmatprep.subr.mxu0 0.0
          %475 = vmatpush1.msra.mxu0 0.0
          %476 = vmatprep.subr.mxu0 0.0
          %477 = vmatpush1.msra.mxu0 0.0
          %478 = vmatprep.subr.mxu0 0.0
          %479 = vmatpush1.msra.mxu0 0.0
          %480 = vmatprep.subr.mxu0 0.0
          %481 = vmatpush1.msra.mxu0 0.0
          %482 = vmatprep.subr.mxu0 0.0
          %483 = vmatpush1.msra.mxu0 0.0
          %484 = vmatprep.subr.mxu0 0.0
          %485 = vmatpush1.msra.mxu0 0.0
          %486 = vmatprep.subr.mxu0 0.0
          %487 = vmatpush1.msra.mxu0 0.0
          %488 = vmatprep.subr.mxu0 0.0
          %489 = vmatpush1.msra.mxu0 0.0
          %490 = vmatprep.subr.mxu0 0.0
          %491 = vmatpush1.msra.mxu0 0.0
          %492 = vmatprep.subr.mxu0 0.0
          %493 = vmatpush1.msra.mxu0 0.0
          %494 = vmatprep.subr.mxu0 0.0
          %495 = vmatpush1.msra.mxu0 0.0
          %496 = vmatprep.subr.mxu0 0.0
          %497 = vmatpush1.msra.mxu0 0.0
          %498 = vmatprep.subr.mxu0 0.0
          %499 = vmatpush1.msra.mxu0 0.0
          %500 = vmatprep.subr.mxu0 0.0
          %501 = vmatpush1.msra.mxu0 0.0
          %502 = vmatprep.subr.mxu0 0.0
          %503 = vmatpush1.msra.mxu0 0.0
          %504 = vmatprep.subr.mxu0 0.0
          %505 = vmatpush1.msra.mxu0 0.0
          %506 = vmatprep.subr.mxu0 0.0
          %507 = vmatpush1.msra.mxu0 0.0
          %508 = vmatprep.subr.mxu0 0.0
          %509 = vmatpush1.msra.mxu0 0.0
          %510 = vmatprep.mubr.f32.mxu0 0.0
          %511 = vmatmul.mubr.f32.gmra.mrb[0].mxu0 %v441
          %v512 = vpop.f32.mrb[0].mxu0
          %v513 = vadd.f32 0.0, %v512
          %v514 = vpop.f32.mrb[0].mxu0
          %515 = vdwg.mxu0
          %516 = vst.msk [vmem:[#allocation2] sm:$0xff] %vm210, %v285
          %517 = vst.msk [vmem:[#allocation2 + $0x8] sm:$0xff] %vm210, %v361
          %518 = vst.msk [vmem:[#allocation2 + $0x10] sm:$0xff] %vm210, %v437
          %519 = vst.msk [vmem:[#allocation2 + $0x18] sm:$0xff] %vm210, %v513
        $region32: #{tpu_custom_call.1} parent=23 // pred_fallthru
          _
        %p520 = scmp.eq.s32.totalorder %s22, 2
        // Predicated region
        $region33: #{tpu_custom_call.1} parent=23 // pred_check
          %p521 = pneg %p520
        $region34: #{tpu_custom_call.1} parent=23 // pred_check_branch
          %523 = sbr.rel (%p521) target = $region36
        $region35: #{tpu_custom_call.1} parent=23 // pred_region
          %v524 = vld [vmem:[#allocation2] sm:$0x1]
          %v525 = vld [vmem:[#allocation2 + $0x8] sm:$0x1]
          %v526 = vld [vmem:[#allocation2 + $0x10] sm:$0x1]
          %v527 = vld [vmem:[#allocation2 + $0x18] sm:$0x1]
          %vm528 = vcmask 131072
          %529 = vst.msk [vmem:[%s158] sm:$0x1] %vm528, %v524
          %530 = vst.msk [vmem:[%s158 + $0x1] sm:$0x1] %vm528, %v525
          %531 = vst.msk [vmem:[%s158 + $0x2] sm:$0x1] %vm528, %v526
          %532 = vst.msk [vmem:[%s158 + $0x3] sm:$0x1] %vm528, %v527
        $region36: #{tpu_custom_call.1} parent=23 // pred_fallthru
          _
        %s533 = sand.u32 %s76, 1
        %s534 = scalar_lea.sflag [#allocation4], %s533
        %s535 = sand.u32 %s76, 1
        %s536 = smul.addr %s535, 4
        %s537 = scalar_lea.vmem [#allocation3], %s536
        // Predicated region
        $region37: #{tpu_custom_call.1} parent=23 // pred_check
          %p538 = pneg %p86
        $region38: #{tpu_custom_call.1} parent=23 // pred_check_branch
          %540 = sbr.rel (%p538) target = $region40
        $region39: #{tpu_custom_call.1} parent=23 // pred_region
          %s541 = smul.u32 4, %s21
          %s543 = ssub.s32 64, 64
          %544 = vsyncadd %s534, %s543
          %s545 = smul.addr %s20, 4
          %s546 = sadd.s32 %s541, %s545
          %s547 = smul.addr %s546, 16
          %s548 = scalar_lea.hbm %s1, %s547
          %s549 = sshll.u32 %s537, 4
          %s550 = int_to_ptr.vmem [resolvable:$true] %s549
          %555 = dma.vmem_to_hbm [thread:$0]  %s550, 64, %s548, %s534, 16, 16, 1
        $region40: #{tpu_custom_call.1} parent=23 // pred_fallthru
          _
      $region24: #{tpu_custom_call.1} parent=5 // pred_fallthru
        _
      %p556 = scmp.le.s32.totalorder 2, %s10
      // Predicated region
      $region41: #{tpu_custom_call.1} parent=5 // pred_check
        %p557 = pneg %p556
      $region42: #{tpu_custom_call.1} parent=5 // pred_check_branch
        %559 = sbr.rel (%p557) target = $region44
      $region43: #{tpu_custom_call.1} parent=5 // pred_region
        %s560 = ssub.s32 %s10, 2
        // Predicated region
        $region45: #{tpu_custom_call.1} parent=43 // pred_check
          %p561 = pneg %p92
        $region46: #{tpu_custom_call.1} parent=43 // pred_check_branch
          %563 = sbr.rel (%p561) target = $region48
        $region47: #{tpu_custom_call.1} parent=43 // pred_region
          %s564 = sand.u32 %s77, 1
          %s565 = scalar_lea.sflag [#allocation4], %s564
          %s566 = sand.u32 %s77, 1
          %s567 = smul.addr %s566, 4
          %s568 = scalar_lea.vmem [#allocation3], %s567
          %569 = dma.done %s565, 64
        $region48: #{tpu_custom_call.1} parent=43 // pred_fallthru
          _
      $region44: #{tpu_custom_call.1} parent=5 // pred_fallthru
        _
    $region6: #{tpu_custom_call.1} parent=1 // loop_footer
      %s14 = sadd.s32 1, %s10
    $region7: #{tpu_custom_call.1} parent=1 // loop_footer_branch
      %9 = sbr.rel target = $region3
    $region8: #{tpu_custom_call.1} parent=1 // loop_exit
      _
    %570 = vsyncpa [#allocation4], 1
    %s571 = scalar_lea.sflag [#allocation4], 1
    %572 = vsyncpa %s571, 1

</llo_original>
